<compile_context>
chip_gen: v5e
topology: v5e:2x2
jax: 0.10.0
libtpu: 0.0.40
codegen_flags: <defaults>
</compile_context>

<pallas_src>
import functools

import jax
import jax.numpy as jnp
from jax import lax
from jax.experimental import pallas as pl
from jax.experimental.pallas import tpu as pltpu


_DEFAULT_VMEM_BUDGET = 12 * 1024 * 1024   # per-step working set target (fits all gens)


def _round_up(x, m):
    return ((x + m - 1) // m) * m


# ---------------------------------------------------------------------------
# Kernels
# ---------------------------------------------------------------------------
def _corr_kernel_direct(a_ref, b_ref, o_ref):
    # a_ref: (C, TJ)  feature_A slab (hw on the lane axis)
    # b_ref: (C, TI)  feature_B slab (hw on the lane axis)
    # o_ref: (TJ, TI) out[j, i] = sum_c A[c, j] * B[c, i]
    o_ref[...] = lax.dot_general(
        a_ref[...], b_ref[...],
        dimension_numbers=(((0,), (0,)), ((), ())),   # contract over c (transposed LHS)
        preferred_element_type=jnp.float32,
    ).astype(o_ref.dtype)


def _corr_kernel_acc(nk, a_ref, b_ref, o_ref, acc_ref):
    # Channel-tiled contraction with an f32 VMEM accumulator (very large c).
    k = pl.program_id(3)

    @pl.when(k == 0)
    def _():
        acc_ref[...] = jnp.zeros_like(acc_ref)

    acc_ref[...] += lax.dot_general(
        a_ref[...], b_ref[...],
        dimension_numbers=(((0,), (0,)), ((), ())),
        preferred_element_type=jnp.float32,
    )

    @pl.when(k == nk - 1)
    def _():
        o_ref[...] = acc_ref[...].astype(o_ref.dtype)


# ---------------------------------------------------------------------------
# Tile selection
# ---------------------------------------------------------------------------
def _select_tiles(hw, c, csize, osize, budget, max_ck):
    """Pick (tj, ti, hw_p, ck, c_pad, nk) so the per-step working set
    (double-buffered A, B and out blocks + optional accumulator) fits `budget`."""
    tj = 128 if hw <= 128 else 256            # never fall back to 128 tiles for hw > 128
    hw_p = _round_up(hw, tj)
    nj = hw_p // tj
    # i-tile candidates: multiples of tj that divide hw_p, largest first, so the
    # B slab is fetched as few times as possible (ideally once per j row).
    ti_cands = [tj * d for d in range(nj, 0, -1) if nj % d == 0]

    def ws(ti, ck, tiled_k):
        return (2 * ck * tj * csize                    # A block (double-buffered)
                + 2 * ck * ti * csize                  # B block (double-buffered)
                + 2 * tj * ti * osize                  # out block (double-buffered)
                + (tj * ti * 4 if tiled_k else 0))     # f32 accumulator scratch

    # Preferred: whole-c slabs (single reduction step, no accumulator scratch).
    if max_ck is None or max_ck >= c:
        for ti in ti_cands:
            if ws(ti, c, False) <= budget:
                return tj, ti, hw_p, c, c, 1

    # Very large c (or forced via max_ck): tile the channel/reduction axis.
    ck_cap = c if max_ck is None else min(c, max_ck)
    ck_cap = max(16, (ck_cap // 16) * 16)
    rem = budget - 2 * tj * tj * osize - tj * tj * 4
    ck_fit = max(16, rem // (4 * tj * csize)) if rem > 0 else 16
    ck = max(16, min(ck_cap, (ck_fit // 16) * 16))
    ti = tj
    for cand in ti_cands:
        if ws(cand, ck, True) <= budget:
            ti = cand
            break
    c_pad = _round_up(c, ck)
    return tj, ti, hw_p, ck, c_pad, c_pad // ck


# ---------------------------------------------------------------------------
# Wrapper
# ---------------------------------------------------------------------------
def feature_correlation(feature_A, feature_B, *,
                        compute_dtype=jnp.bfloat16, out_dtype=None,
                        vmem_budget_bytes=_DEFAULT_VMEM_BUDGET, max_ck=None):
    """Pallas TPU implementation of FeatureCorrelation.forward.

    feature_A, feature_B: (b, c, h, w).  Returns (b, h*w, h, w) with
        out[b, j, hi, wi] = sum_c A[b, c, hj, wj] * B[b, c, hi, wi],  j = wj*h + hj

    compute_dtype: MXU input dtype (bf16 default; f32 accumulation always).
    out_dtype: output dtype; defaults to the input dtype (f32 in -> f32 out).
    max_ck: optional cap on the channel (reduction) tile; mainly for testing.
    """
    b, c, h, w = feature_A.shape
    hw = h * w
    if out_dtype is None:
        out_dtype = feature_A.dtype
    if compute_dtype is None:
        compute_dtype = feature_A.dtype

    csize = jnp.dtype(compute_dtype).itemsize
    osize = jnp.dtype(out_dtype).itemsize
    tj, ti, hw_p, ck, c_pad, nk = _select_tiles(
        hw, c, csize, osize, vmem_budget_bytes, max_ck)

    fa = feature_A.astype(compute_dtype)
    fb = feature_B.astype(compute_dtype)

    # When c > hw the (h,w)->(w,h) pre-transpose of A is a bigger HBM copy than
    # permuting the (hw, hw) output afterwards, so defer the permutation to the
    # output's j axis instead (fused with the depad slice below).
    permute_output = c > hw
    if permute_output:
        a_mat = fa.reshape(b, c, hw)                                 # j in (h, w) order
    else:
        a_mat = jnp.transpose(fa, (0, 1, 3, 2)).reshape(b, c, hw)    # j in (w, h) order
    b_mat = fb.reshape(b, c, hw)                                     # i in (h, w) order

    # Zero-pad hw (lanes) to the tile size -> unmasked, lane-dense stores.  Pad c
    # only when the reduction axis is tiled.  Zeros cannot leak into the result.
    pad_hw = hw_p - hw
    pad_c = c_pad - c
    if pad_hw or pad_c:
        a_mat = jnp.pad(a_mat, ((0, 0), (0, pad_c), (0, pad_hw)))
        b_mat = jnp.pad(b_mat, ((0, 0), (0, pad_c), (0, pad_hw)))

    grid = (b, hw_p // tj, hw_p // ti, nk)

    if nk == 1:
        kernel = _corr_kernel_direct
        scratch = []
        # A's block index is constant along the inner i (and k) axes -> the A
        # slab stays resident in VMEM for the whole i loop (no re-DMA).
        a_spec = pl.BlockSpec((pl.Squeezed(), c_pad, tj), lambda bb, j, i, k: (bb, 0, j))
        b_spec = pl.BlockSpec((pl.Squeezed(), c_pad, ti), lambda bb, j, i, k: (bb, 0, i))
    else:
        kernel = functools.partial(_corr_kernel_acc, nk)
        scratch = [pltpu.VMEM((tj, ti), jnp.float32)]
        a_spec = pl.BlockSpec((pl.Squeezed(), ck, tj), lambda bb, j, i, k: (bb, k, j))
        b_spec = pl.BlockSpec((pl.Squeezed(), ck, ti), lambda bb, j, i, k: (bb, k, i))
    out_spec = pl.BlockSpec((pl.Squeezed(), tj, ti), lambda bb, j, i, k: (bb, j, i))

    cost = pl.CostEstimate(
        flops=2 * b * hw_p * hw_p * c_pad,
        transcendentals=0,
        bytes_accessed=(a_mat.size + b_mat.size) * csize + b * hw_p * hw_p * osize,
    )

    feature_mul = pl.pallas_call(
        kernel,
        out_shape=jax.ShapeDtypeStruct((b, hw_p, hw_p), out_dtype),
        grid_spec=pltpu.PrefetchScalarGridSpec(
            num_scalar_prefetch=0,
            grid=grid,
            in_specs=[a_spec, b_spec],
            out_specs=out_spec,
            scratch_shapes=scratch,
        ),
        compiler_params=pltpu.CompilerParams(
            # b/j are the axes a second TensorCore (v7x) should split; keeping
            # i/k "arbitrary" preserves the A-resident inner loop on each core.
            dimension_semantics=("parallel", "parallel", "arbitrary", "arbitrary"),
            vmem_limit_bytes=32 * 1024 * 1024,
        ),
        cost_estimate=cost,
    )(a_mat, b_mat)

    if pad_hw:
        feature_mul = feature_mul[:, :hw, :hw]

    if permute_output:
        # j currently indexes (hj, wj); PyTorch wants j = wj*h + hj.
        correlation = (feature_mul.reshape(b, h, w, h, w)
                       .transpose(0, 2, 1, 3, 4)
                       .reshape(b, hw, h, w))
    else:
        # Already in PyTorch's final index order -> pure reshape, no transpose.
        correlation = feature_mul.reshape(b, hw, h, w)
    return correlation


def _reference(feature_A, feature_B):
    # Pure-JAX transcription of the PyTorch forward (f32 accumulation).
    b, c, h, w = feature_A.shape
    a = jnp.transpose(feature_A, (0, 1, 3, 2)).reshape(b, c, h * w).astype(jnp.float32)
    bt = jnp.transpose(feature_B.reshape(b, c, h * w), (0, 2, 1)).astype(jnp.float32)
    mul = jnp.einsum("bic,bcj->bij", bt, a)
    return jnp.transpose(mul.reshape(b, h, w, h * w), (0, 3, 1, 2))


if __name__ == "__main__":
    key = jax.random.PRNGKey(0)
    keys = jax.random.split(key, 6)

    # 1) c < hw path (A pre-transposed, output is a pure reshape), f32 compute.
    b, c, h, w = 2, 4, 16, 16
    fa = jax.random.normal(keys[0], (b, c, h, w), dtype=jnp.float32)
    fb = jax.random.normal(keys[1], (b, c, h, w), dtype=jnp.float32)
    out = jax.block_until_ready(feature_correlation(fa, fb, compute_dtype=jnp.float32))
    ref = _reference(fa, fb)
    assert out.shape == (b, h * w, h, w), out.shape
    assert out.dtype == jnp.float32, out.dtype
    assert jnp.allclose(out, ref, atol=1e-3, rtol=1e-3), "f32 path mismatch"

    # 2) default bf16 compute / f32 output, hw not a multiple of 128 (pad + depad).
    b, c, h, w = 1, 8, 15, 15
    fa = jax.random.normal(keys[2], (b, c, h, w), dtype=jnp.float32)
    fb = jax.random.normal(keys[3], (b, c, h, w), dtype=jnp.float32)
    out = jax.block_until_ready(feature_correlation(fa, fb))
    ref = _reference(fa.astype(jnp.bfloat16), fb.astype(jnp.bfloat16))
    assert out.shape == (b, h * w, h, w), out.shape
    assert out.dtype == jnp.float32, out.dtype
    assert jnp.allclose(out, ref, atol=2e-2, rtol=2e-2), "bf16 path mismatch"

    # 3) c > hw path (output-side permutation) + forced channel tiling (nk > 1).
    b, c, h, w = 1, 64, 4, 4
    fa = jax.random.normal(keys[4], (b, c, h, w), dtype=jnp.float32)
    fb = jax.random.normal(keys[5], (b, c, h, w), dtype=jnp.float32)
    out = jax.block_until_ready(
        feature_correlation(fa, fb, compute_dtype=jnp.float32, max_ck=16))
    ref = _reference(fa, fb)
    assert out.shape == (b, h * w, h, w), out.shape
    assert jnp.allclose(out, ref, atol=1e-2, rtol=1e-2), "k-tiled path mismatch"

    print("KERNEL_OK")
</pallas_src>

<mosaic_0001>
module attributes {stable_mosaic.version = 11 : i64} {
  func.func @_corr_kernel_direct(%arg0: i32, %arg1: i32, %arg2: i32, %arg3: i32, %arg4: memref<1x4x256xf32, #tpu.memory_space<vmem>>, %arg5: memref<1x4x256xf32, #tpu.memory_space<vmem>>, %arg6: memref<1x256x256xf32, #tpu.memory_space<vmem>>) attributes {dimension_semantics = [#tpu.dimension_semantics<parallel>, #tpu.dimension_semantics<parallel>, #tpu.dimension_semantics<arbitrary>, #tpu.dimension_semantics<arbitrary>], iteration_bounds = array<i64: 2, 1, 1, 1>, scalar_prefetch = 0 : i64, scratch_operands = 0 : i64, tpu.core_type = #tpu.core_type<tc>, window_params = [{transform_indices = @transform_0, window_bounds = array<i64: 1, 4, 256>}, {transform_indices = @transform_1, window_bounds = array<i64: 1, 4, 256>}, {transform_indices = @transform_2, window_bounds = array<i64: 1, 256, 256>}]} {
    %c0 = arith.constant 0 : index
    %c0_0 = arith.constant 0 : index
    %c0_1 = arith.constant 0 : index
    %0 = vector.load %arg4[%c0, %c0_0, %c0_1] : memref<1x4x256xf32, #tpu.memory_space<vmem>>, vector<1x4x256xf32>
    %1 = vector.shape_cast %0 : vector<1x4x256xf32> to vector<4x256xf32>
    %c0_2 = arith.constant 0 : index
    %c0_3 = arith.constant 0 : index
    %c0_4 = arith.constant 0 : index
    %2 = vector.load %arg5[%c0_2, %c0_3, %c0_4] : memref<1x4x256xf32, #tpu.memory_space<vmem>>, vector<1x4x256xf32>
    %3 = vector.shape_cast %2 : vector<1x4x256xf32> to vector<4x256xf32>
    %cst = arith.constant dense<0.000000e+00> : vector<256x256xf32>
    %4 = tpu.matmul %1, %3, %cst {dimension_numbers = #tpu.dot_dimension_numbers<[0], [0], [1], [1], [0, 1, 1, 1], [], []>} : vector<4x256xf32>, vector<4x256xf32>, vector<256x256xf32> -> vector<256x256xf32>
    %c0_5 = arith.constant 0 : index
    %c0_6 = arith.constant 0 : index
    %c0_7 = arith.constant 0 : index
    %5 = vector.load %arg6[%c0_5, %c0_6, %c0_7] : memref<1x256x256xf32, #tpu.memory_space<vmem>>, vector<1x256x256xf32>
    %6 = vector.shape_cast %5 : vector<1x256x256xf32> to vector<256x256xf32>
    %7 = vector.shape_cast %4 : vector<256x256xf32> to vector<1x256x256xf32>
    tpu.vector_store %arg6[%c0_5, %c0_6, %c0_7], %7 {strides = array<i32>} : memref<1x256x256xf32, #tpu.memory_space<vmem>>, vector<1x256x256xf32>,
    return
  }
  func.func @transform_0(%arg0: i32, %arg1: i32, %arg2: i32, %arg3: i32) -> (i32, i32, i32) {
    %c0_i32 = arith.constant 0 : i32
    %c0_i32_0 = arith.constant 0 : i32
    return %arg0, %c0_i32, %arg1 : i32, i32, i32
  }
  func.func @transform_1(%arg0: i32, %arg1: i32, %arg2: i32, %arg3: i32) -> (i32, i32, i32) {
    %c0_i32 = arith.constant 0 : i32
    %c0_i32_0 = arith.constant 0 : i32
    return %arg0, %c0_i32, %arg2 : i32, i32, i32
  }
  func.func @transform_2(%arg0: i32, %arg1: i32, %arg2: i32, %arg3: i32) -> (i32, i32, i32) {
    %c0_i32 = arith.constant 0 : i32
    return %arg0, %arg1, %arg2 : i32, i32, i32
  }
}

</mosaic_0001>

<llo_original>
// kernel: tpu_custom_call.1
$region0: #{tpu_custom_call.1}
  #allocation0 [shape = 'u32[]', space=smem, size = 0x4, offset = 0x4, fixed_abs, tag = 'smem constant byte address 0x4 - core index']
  #allocation1 [shape = 'u32[72,128]{1,0:T(1,128)}', space=vmem, size = 0x9000, scoped, tag = 'internal scratch']
  %s0 = inlined_call_operand.hbm [shape: f32[2,4,256], index: 0, kind: input, shape index: {}]
  %s1 = inlined_call_operand.hbm [shape: f32[2,4,256], index: 1, kind: input, shape index: {}]
  %s2 = inlined_call_operand.hbm [shape: f32[2,256,256], index: 2, kind: output, shape index: {}]
  %s3 = sld [smem:[#allocation0]]
  $region49: #{tpu_custom_call.1} parent=0
    _
  %s5 = ssub.s32 1, %s3
  %s6 = scalar_select 0, %s5, %s3
  $region1: #{tpu_custom_call.1} parent=0
    #allocation2 [shape = 'u8[8192]{0}', space=vmem, size = 0x2000, scoped, tag = 'input window, operand 0']
    #allocation3 [shape = 's32[2]{0}', space=sflag, size = 0x8, scoped, tag = 'scoped memory for tpu_custom_call.1']
    #allocation4 [shape = 's32[2]{0}', space=sflag, size = 0x8, scoped, tag = 'scoped memory for tpu_custom_call.1']
    #allocation5 [shape = 'u8[8192]{0}', space=vmem, size = 0x2000, scoped, tag = 'input window, operand 1']
    #allocation6 [shape = 's32[2]{0}', space=sflag, size = 0x8, scoped, tag = 'scoped memory for tpu_custom_call.1']
    #allocation7 [shape = 'u8[524288]{0}', space=vmem, size = 0x80000, scoped, tag = 'output window, operand 0']
    %7 = vsyncpa [#allocation3], 0
    %s8 = scalar_lea.sflag [#allocation3], 1
    %9 = vsyncpa %s8, 0
    %10 = vsyncpa [#allocation6], 0
    %s11 = scalar_lea.sflag [#allocation6], 1
    %12 = vsyncpa %s11, 0
    %13 = vsyncpa [#allocation4], 0
    %s14 = scalar_lea.sflag [#allocation4], 1
    %15 = vsyncpa %s14, 0
    loop: start=0, step=1, limit=4
    $region2: #{tpu_custom_call.1} parent=1 // loop_pre_header
      _
    $region3: #{tpu_custom_call.1} parent=1 // loop_header
      %s17 = sphi 0, %s21
      %p18 = scmp.ge.s32.totalorder %s17, 4
      %s24 = sphi 0, %s50
      %s25 = sphi 0, %s46
      %s26 = sphi 0, %s42
      %s27 = sphi 0, %s38
      %s28 = sphi 0, %s24
      %s29 = sphi 0, %s25
      %s30 = sphi 0, %s26
      %s31 = sphi 0, %s27
      %s32 = sphi 0, %s28
      %s33 = sphi 0, %s29
      %s34 = sphi 0, %s30
      %s35 = sphi 0, %s31
      %s55 = sphi 0, %s57
      %s58 = sphi 0, %s55
      %s59 = sphi 0, %s58
      %s75 = sphi 0, %s59
      %s83 = sphi 0, %s85
      %s86 = sphi 0, %s83
      %s87 = sphi 0, %s86
      %s103 = sphi 0, %s87
      %s113 = sphi 0, %s115
      %s116 = sphi 0, %s113
      %s117 = sphi 0, %s116
      %s133 = sphi 0, %s117
    $region4: #{tpu_custom_call.1} parent=1 // loop_header_branch
      %20 = sbr.rel (%p18) target = $region8
    $region5: #{tpu_custom_call.1} parent=1 // loop_body
      %s22 = ssub.s32 %s17, 1
      %s23 = ssub.s32 %s17, 2
      %s36 = sadd.s32 1, %s27
      %p37 = scmp.ge.s32.totalorder %s36, 1
      %s38 = scalar_select %p37, 0, %s36
      %s39 = sadd.s32 1, %s26
      %s40 = scalar_select %p37, %s39, %s26
      %p41 = scmp.ge.s32.totalorder %s40, 1
      %s42 = scalar_select %p41, 0, %s40
      %s43 = sadd.s32 1, %s25
      %s44 = scalar_select %p41, %s43, %s25
      %p45 = scmp.ge.s32.totalorder %s44, 1
      %s46 = scalar_select %p45, 0, %s44
      %s47 = sadd.s32 1, %s24
      %s48 = scalar_select %p45, %s47, %s24
      %p49 = scmp.ge.s32.totalorder %s48, 2
      %s50 = scalar_select %p49, 0, %s48
      %s51 = ssub.s32 %s24, %s50
      %s52 = ssub.s32 %s25, %s46
      %s53 = sor.u32 %s51, %s52
      %p54 = scmp.eq.s32.totalorder %s53, 0
      %s56 = sadd.s32 %s55, 1
      %s57 = scalar_select %p54, %s55, %s56
      %p60 = pneg %p54
      %p61 = scmp.eq.s32.totalorder %s17, 1
      %p62 = por %p60, %p61
      %p63 = scmp.ne.s32.totalorder %s55, %s58
      %p64 = scmp.eq.s32.totalorder %s17, 0
      %p65 = por %p63, %p64
      %p66 = scmp.ne.s32.totalorder %s55, %s58
      %p67 = scmp.eq.s32.totalorder %s22, 1
      %p68 = por %p66, %p67
      %p69 = scmp.ne.s32.totalorder %s58, %s59
      %p70 = scmp.eq.s32.totalorder %s22, 0
      %p71 = por %p69, %p70
      %p72 = scmp.ne.s32.totalorder %s58, %s59
      %p73 = scmp.eq.s32.totalorder %s23, 1
      %p74 = por %p72, %p73
      %p76 = scmp.ne.s32.totalorder %s59, %s75
      %p77 = scmp.eq.s32.totalorder %s23, 0
      %p78 = por %p76, %p77
      %s79 = ssub.s32 %s24, %s50
      %s80 = ssub.s32 %s26, %s42
      %s81 = sor.u32 %s79, %s80
      %p82 = scmp.eq.s32.totalorder %s81, 0
      %s84 = sadd.s32 %s83, 1
      %s85 = scalar_select %p82, %s83, %s84
      %p88 = pneg %p82
      %p89 = scmp.eq.s32.totalorder %s17, 1
      %p90 = por %p88, %p89
      %p91 = scmp.ne.s32.totalorder %s83, %s86
      %p92 = scmp.eq.s32.totalorder %s17, 0
      %p93 = por %p91, %p92
      %p94 = scmp.ne.s32.totalorder %s83, %s86
      %p95 = scmp.eq.s32.totalorder %s22, 1
      %p96 = por %p94, %p95
      %p97 = scmp.ne.s32.totalorder %s86, %s87
      %p98 = scmp.eq.s32.totalorder %s22, 0
      %p99 = por %p97, %p98
      %p100 = scmp.ne.s32.totalorder %s86, %s87
      %p101 = scmp.eq.s32.totalorder %s23, 1
      %p102 = por %p100, %p101
      %p104 = scmp.ne.s32.totalorder %s87, %s103
      %p105 = scmp.eq.s32.totalorder %s23, 0
      %p106 = por %p104, %p105
      %s107 = ssub.s32 %s24, %s50
      %s108 = ssub.s32 %s25, %s46
      %s109 = sor.u32 %s107, %s108
      %s110 = ssub.s32 %s26, %s42
      %s111 = sor.u32 %s109, %s110
      %p112 = scmp.eq.s32.totalorder %s111, 0
      %s114 = sadd.s32 %s113, 1
      %s115 = scalar_select %p112, %s113, %s114
      %p118 = pneg %p112
      %p119 = scmp.eq.s32.totalorder %s17, 1
      %p120 = por %p118, %p119
      %p121 = scmp.ne.s32.totalorder %s113, %s116
      %p122 = scmp.eq.s32.totalorder %s17, 0
      %p123 = por %p121, %p122
      %p124 = scmp.ne.s32.totalorder %s113, %s116
      %p125 = scmp.eq.s32.totalorder %s22, 1
      %p126 = por %p124, %p125
      %p127 = scmp.ne.s32.totalorder %s116, %s117
      %p128 = scmp.eq.s32.totalorder %s22, 0
      %p129 = por %p127, %p128
      %p130 = scmp.ne.s32.totalorder %s116, %s117
      %p131 = scmp.eq.s32.totalorder %s23, 1
      %p132 = por %p130, %p131
      %p134 = scmp.ne.s32.totalorder %s117, %s133
      %p135 = scmp.eq.s32.totalorder %s23, 0
      %p136 = por %p134, %p135
      %p137 = scmp.le.s32.totalorder 1, %s17
      %p138 = scmp.lt.s32.totalorder %s17, 3
      %p139 = pnand %p137, %p138
      %p140 = pneg %p139
      // Predicated region
      $region9: #{tpu_custom_call.1} parent=5 // pred_check
        _
      $region10: #{tpu_custom_call.1} parent=5 // pred_check_branch
        %142 = sbr.rel (%p139) target = $region12
      $region11: #{tpu_custom_call.1} parent=5 // pred_region
        %s143 = ssub.s32 %s17, 1
      $region12: #{tpu_custom_call.1} parent=5 // pred_fallthru
        _
      %p144 = scmp.lt.s32.totalorder %s17, 2
      // Predicated region
      $region13: #{tpu_custom_call.1} parent=5 // pred_check
        %p145 = pneg %p144
      $region14: #{tpu_custom_call.1} parent=5 // pred_check_branch
        %147 = sbr.rel (%p145) target = $region16
      $region15: #{tpu_custom_call.1} parent=5 // pred_region
        // Predicated region
        $region17: #{tpu_custom_call.1} parent=15 // pred_check
          %p148 = pneg %p65
        $region18: #{tpu_custom_call.1} parent=15 // pred_check_branch
          %150 = sbr.rel (%p148) target = $region20
        $region19: #{tpu_custom_call.1} parent=15 // pred_region
          %s151 = sand.u32 %s55, 1
          %s152 = scalar_lea.sflag [#allocation3], %s151
          %s153 = sand.u32 %s55, 1
          %s154 = smul.addr %s153, 8
          %s155 = scalar_lea.vmem [#allocation2], %s154
          %s156 = smul.u32 2, %s25
          %158 = vsyncadd %s152, 0
          %s159 = smul.addr %s24, 2
          %s160 = sadd.s32 %s156, %s159
          %s161 = smul.addr %s160, 4
          %s162 = scalar_lea.hbm %s0, %s161
          %s164 = sshll.u32 %s162, 4
          %s165 = int_to_ptr.hbm [resolvable:$true] %s164
          %s166 = sshll.u32 %s155, 4
          %s167 = int_to_ptr.vmem [resolvable:$true] %s166
          %169 = dma.hbm_to_vmem [thread:$0]  %s165, 128, %s167, %s152
        $region20: #{tpu_custom_call.1} parent=15 // pred_fallthru
          _
        // Predicated region
        $region21: #{tpu_custom_call.1} parent=15 // pred_check
          %p170 = pneg %p93
        $region22: #{tpu_custom_call.1} parent=15 // pred_check_branch
          %172 = sbr.rel (%p170) target = $region24
        $region23: #{tpu_custom_call.1} parent=15 // pred_region
          %s173 = sand.u32 %s83, 1
          %s174 = scalar_lea.sflag [#allocation6], %s173
          %s175 = sand.u32 %s83, 1
          %s176 = smul.addr %s175, 8
          %s177 = scalar_lea.vmem [#allocation5], %s176
          %s178 = smul.u32 2, %s26
          %180 = vsyncadd %s174, 0
          %s181 = smul.addr %s24, 2
          %s182 = sadd.s32 %s178, %s181
          %s183 = smul.addr %s182, 4
          %s184 = scalar_lea.hbm %s1, %s183
          %s186 = sshll.u32 %s184, 4
          %s187 = int_to_ptr.hbm [resolvable:$true] %s186
          %s188 = sshll.u32 %s177, 4
          %s189 = int_to_ptr.vmem [resolvable:$true] %s188
          %191 = dma.hbm_to_vmem [thread:$0]  %s187, 128, %s189, %s174
        $region24: #{tpu_custom_call.1} parent=15 // pred_fallthru
          _
      $region16: #{tpu_custom_call.1} parent=5 // pred_fallthru
        _
      %p192 = scmp.le.s32.totalorder 1, %s17
      %p193 = scmp.lt.s32.totalorder %s17, 3
      %p194 = pnand %p192, %p193
      %p195 = pneg %p194
      // Predicated region
      $region25: #{tpu_custom_call.1} parent=5 // pred_check
        _
      $region26: #{tpu_custom_call.1} parent=5 // pred_check_branch
        %197 = sbr.rel (%p194) target = $region28
      $region27: #{tpu_custom_call.1} parent=5 // pred_region
        %s198 = ssub.s32 %s17, 1
        %s199 = sand.u32 %s58, 1
        %s200 = scalar_lea.sflag [#allocation3], %s199
        %s201 = sand.u32 %s58, 1
        %s202 = smul.addr %s201, 8
        %s203 = scalar_lea.vmem [#allocation2], %s202
        // Predicated region
        $region29: #{tpu_custom_call.1} parent=27 // pred_check
          %p204 = pneg %p71
        $region30: #{tpu_custom_call.1} parent=27 // pred_check_branch
          %206 = sbr.rel (%p204) target = $region32
        $region31: #{tpu_custom_call.1} parent=27 // pred_region
          %208 = dma.done %s200, 128
        $region32: #{tpu_custom_call.1} parent=27 // pred_fallthru
          _
        %s209 = sand.u32 %s86, 1
        %s210 = scalar_lea.sflag [#allocation6], %s209
        %s211 = sand.u32 %s86, 1
        %s212 = smul.addr %s211, 8
        %s213 = scalar_lea.vmem [#allocation5], %s212
        // Predicated region
        $region33: #{tpu_custom_call.1} parent=27 // pred_check
          %p214 = pneg %p99
        $region34: #{tpu_custom_call.1} parent=27 // pred_check_branch
          %216 = sbr.rel (%p214) target = $region36
        $region35: #{tpu_custom_call.1} parent=27 // pred_region
          %218 = dma.done %s210, 128
        $region36: #{tpu_custom_call.1} parent=27 // pred_fallthru
          _
        %s219 = sand.u32 %s58, 1
        %s220 = scalar_lea.sflag [#allocation3], %s219
        %s221 = sand.u32 %s58, 1
        %s222 = smul.addr %s221, 8
        %s223 = scalar_lea.vmem [#allocation2], %s222
        %p224 = pneg %p71
        %p225 = pneg %p68
        %s226 = sand.u32 %s86, 1
        %s227 = scalar_lea.sflag [#allocation6], %s226
        %s228 = sand.u32 %s86, 1
        %s229 = smul.addr %s228, 8
        %s230 = scalar_lea.vmem [#allocation5], %s229
        %p231 = pneg %p99
        %p232 = pneg %p96
        %p233 = pneg %p129
        %p234 = pneg %p126
        %s235 = sand.u32 %s116, 1
        %s236 = scalar_lea.sflag [#allocation4], %s235
        %s237 = sand.u32 %s116, 1
        %s238 = smul.addr %s237, 512
        %s239 = scalar_lea.vmem [#allocation7], %s238
        %s240 = smul.u32 2, %s29
        %s241 = smul.u32 2, %s30
        %s242 = smul.u32 32, %s29
        %s243 = smul.u32 2, %s30
        %v244 = vld [vmem:[%s203] sm:$0xff]
        %v245 = vld [vmem:[%s213] sm:$0xff]
        %247 = vst [vmem:[#allocation1] ss:$2 sm:$0xff] %v244
        %v248 = vld.sshfl [vmem:[#allocation1] sm:$0xff pattern:$0x75316420]
        %v249 = vld.sshfl [vmem:[#allocation1 + $0x8] sm:$0xff pattern:$0x75316420]
        %252 = vxpose.xlu0.b32.start [1/16] %v248, 128
        %253 = vxpose.xlu0.b32.cont [2/16] 0.0, 128
        %254 = vxpose.xlu0.b32.cont [3/16] 0.0, 128
        %255 = vxpose.xlu0.b32.cont [4/16] 0.0, 128
        %256 = vxpose.xlu0.b32.cont [5/16] 0.0, 128
        %257 = vxpose.xlu0.b32.cont [6/16] 0.0, 128
        %258 = vxpose.xlu0.b32.cont [7/16] 0.0, 128
        %259 = vxpose.xlu0.b32.cont [8/16] 0.0, 128
        %260 = vxpose.xlu0.b32.cont [9/16] 0.0, 128
        %261 = vxpose.xlu0.b32.cont [10/16] 0.0, 128
        %262 = vxpose.xlu0.b32.cont [11/16] 0.0, 128
        %263 = vxpose.xlu0.b32.cont [12/16] 0.0, 128
        %264 = vxpose.xlu0.b32.cont [13/16] 0.0, 128
        %265 = vxpose.xlu0.b32.cont [14/16] 0.0, 128
        %266 = vxpose.xlu0.b32.cont [15/16] 0.0, 128
        %267 = vxpose.xlu0.b32.end [16/16] 0.0, 128
        %v268 = vpop.trf.xlu0
        %v269 = vpop.trf.xlu0
        %v270 = vpop.trf.xlu0
        %v271 = vpop.trf.xlu0
        %v272 = vpop.trf.xlu0
        %v273 = vpop.trf.xlu0
        %v274 = vpop.trf.xlu0
        %v275 = vpop.trf.xlu0
        %v276 = vpop.trf.xlu0
        %v277 = vpop.trf.xlu0
        %v278 = vpop.trf.xlu0
        %v279 = vpop.trf.xlu0
        %v280 = vpop.trf.xlu0
        %v281 = vpop.trf.xlu0
        %v282 = vpop.trf.xlu0
        %v283 = vpop.trf.xlu0
        %284 = vxpose.xlu0.b32.start [1/16] %v249, 128
        %285 = vxpose.xlu0.b32.cont [2/16] 0.0, 128
        %286 = vxpose.xlu0.b32.cont [3/16] 0.0, 128
        %287 = vxpose.xlu0.b32.cont [4/16] 0.0, 128
        %288 = vxpose.xlu0.b32.cont [5/16] 0.0, 128
        %289 = vxpose.xlu0.b32.cont [6/16] 0.0, 128
        %290 = vxpose.xlu0.b32.cont [7/16] 0.0, 128
        %291 = vxpose.xlu0.b32.cont [8/16] 0.0, 128
        %292 = vxpose.xlu0.b32.cont [9/16] 0.0, 128
        %293 = vxpose.xlu0.b32.cont [10/16] 0.0, 128
        %294 = vxpose.xlu0.b32.cont [11/16] 0.0, 128
        %295 = vxpose.xlu0.b32.cont [12/16] 0.0, 128
        %296 = vxpose.xlu0.b32.cont [13/16] 0.0, 128
        %297 = vxpose.xlu0.b32.cont [14/16] 0.0, 128
        %298 = vxpose.xlu0.b32.cont [15/16] 0.0, 128
        %299 = vxpose.xlu0.b32.end [16/16] 0.0, 128
        %v300 = vpop.trf.xlu0
        %v301 = vpop.trf.xlu0
        %v302 = vpop.trf.xlu0
        %v303 = vpop.trf.xlu0
        %v304 = vpop.trf.xlu0
        %v305 = vpop.trf.xlu0
        %v306 = vpop.trf.xlu0
        %v307 = vpop.trf.xlu0
        %v308 = vpop.trf.xlu0
        %v309 = vpop.trf.xlu0
        %v310 = vpop.trf.xlu0
        %v311 = vpop.trf.xlu0
        %v312 = vpop.trf.xlu0
        %v313 = vpop.trf.xlu0
        %v314 = vpop.trf.xlu0
        %v315 = vpop.trf.xlu0
        %317 = vst [vmem:[#allocation1] ss:$2 sm:$0xff] %v245
        %v318 = vld.sshfl [vmem:[#allocation1] sm:$0xff pattern:$0x75316420]
        %v319 = vld.sshfl [vmem:[#allocation1 + $0x8] sm:$0xff pattern:$0x75316420]
        %vm320 = vcmask 31744
        %v322 = vsel %vm320, %v268, 0
        %v325 = vsel %vm320, %v269, 0
        %v328 = vsel %vm320, %v270, 0
        %v331 = vsel %vm320, %v271, 0
        %v334 = vsel %vm320, %v272, 0
        %v337 = vsel %vm320, %v273, 0
        %v340 = vsel %vm320, %v274, 0
        %v343 = vsel %vm320, %v275, 0
        %v346 = vsel %vm320, %v276, 0
        %v349 = vsel %vm320, %v277, 0
        %v352 = vsel %vm320, %v278, 0
        %v355 = vsel %vm320, %v279, 0
        %v358 = vsel %vm320, %v280, 0
        %v361 = vsel %vm320, %v281, 0
        %v364 = vsel %vm320, %v282, 0
        %v367 = vsel %vm320, %v283, 0
        %v370 = vsel %vm320, %v300, 0
        %v373 = vsel %vm320, %v301, 0
        %v376 = vsel %vm320, %v302, 0
        %v379 = vsel %vm320, %v303, 0
        %v382 = vsel %vm320, %v304, 0
        %v385 = vsel %vm320, %v305, 0
        %v388 = vsel %vm320, %v306, 0
        %v391 = vsel %vm320, %v307, 0
        %v394 = vsel %vm320, %v308, 0
        %v397 = vsel %vm320, %v309, 0
        %v400 = vsel %vm320, %v310, 0
        %v403 = vsel %vm320, %v311, 0
        %v406 = vsel %vm320, %v312, 0
        %v409 = vsel %vm320, %v313, 0
        %v412 = vsel %vm320, %v314, 0
        %v415 = vsel %vm320, %v315, 0
        %vm417 = vcmask 1043456
        %v418 = vsel %vm417, %v318, 0
        %v420 = vsel %vm417, %v319, 0
        %422 = vmatpush.msra.mxu0 0.0
        %423 = vmatpush.msra.mxu0 0.0
        %424 = vmatpush.msra.mxu0 0.0
        %425 = vmatpush.msra.mxu0 0.0
        %426 = vmatpush.msra.mxu0 0.0
        %427 = vmatpush.msra.mxu0 0.0
        %428 = vmatpush.msra.mxu0 0.0
        %429 = vmatpush.msra.mxu0 0.0
        %430 = vmatpush.msra.mxu0 0.0
        %431 = vmatpush.msra.mxu0 0.0
        %432 = vmatpush.msra.mxu0 0.0
        %433 = vmatpush.msra.mxu0 0.0
        %434 = vmatpush.msra.mxu0 0.0
        %435 = vmatpush.msra.mxu0 0.0
        %436 = vmatpush.msra.mxu0 0.0
        %437 = vmatpush.msra.mxu0 %v418
        %438 = vmatmul.f32.gmra.mxu0 %v322
        %v439 = vpop.f32.mrf.mxu0
        %v440 = vadd.f32 0.0, %v439
        %441 = vmatmul.f32.gmra.mxu0 %v325
        %v442 = vpop.f32.mrf.mxu0
        %v443 = vadd.f32 0.0, %v442
        %444 = vmatmul.f32.gmra.mxu0 %v328
        %v445 = vpop.f32.mrf.mxu0
        %v446 = vadd.f32 0.0, %v445
        %447 = vmatmul.f32.gmra.mxu0 %v331
        %v448 = vpop.f32.mrf.mxu0
        %v449 = vadd.f32 0.0, %v448
        %450 = vmatmul.f32.gmra.mxu0 %v334
        %v451 = vpop.f32.mrf.mxu0
        %v452 = vadd.f32 0.0, %v451
        %453 = vmatmul.f32.gmra.mxu0 %v337
        %v454 = vpop.f32.mrf.mxu0
        %v455 = vadd.f32 0.0, %v454
        %456 = vmatmul.f32.gmra.mxu0 %v340
        %v457 = vpop.f32.mrf.mxu0
        %v458 = vadd.f32 0.0, %v457
        %459 = vmatmul.f32.gmra.mxu0 %v343
        %v460 = vpop.f32.mrf.mxu0
        %v461 = vadd.f32 0.0, %v460
        %462 = vmatmul.f32.gmra.mxu0 %v346
        %v463 = vpop.f32.mrf.mxu0
        %v464 = vadd.f32 0.0, %v463
        %465 = vmatmul.f32.gmra.mxu0 %v349
        %v466 = vpop.f32.mrf.mxu0
        %v467 = vadd.f32 0.0, %v466
        %468 = vmatmul.f32.gmra.mxu0 %v352
        %v469 = vpop.f32.mrf.mxu0
        %v470 = vadd.f32 0.0, %v469
        %471 = vmatmul.f32.gmra.mxu0 %v355
        %v472 = vpop.f32.mrf.mxu0
        %v473 = vadd.f32 0.0, %v472
        %474 = vmatmul.f32.gmra.mxu0 %v358
        %v475 = vpop.f32.mrf.mxu0
        %v476 = vadd.f32 0.0, %v475
        %477 = vmatmul.f32.gmra.mxu0 %v361
        %v478 = vpop.f32.mrf.mxu0
        %v479 = vadd.f32 0.0, %v478
        %480 = vmatmul.f32.gmra.mxu0 %v364
        %v481 = vpop.f32.mrf.mxu0
        %v482 = vadd.f32 0.0, %v481
        %483 = vmatmul.f32.gmra.mxu0 %v367
        %v484 = vpop.f32.mrf.mxu0
        %v485 = vadd.f32 0.0, %v484
        %486 = vmatmul.f32.gmra.mxu0 %v370
        %v487 = vpop.f32.mrf.mxu0
        %v488 = vadd.f32 0.0, %v487
        %489 = vmatmul.f32.gmra.mxu0 %v373
        %v490 = vpop.f32.mrf.mxu0
        %v491 = vadd.f32 0.0, %v490
        %492 = vmatmul.f32.gmra.mxu0 %v376
        %v493 = vpop.f32.mrf.mxu0
        %v494 = vadd.f32 0.0, %v493
        %495 = vmatmul.f32.gmra.mxu0 %v379
        %v496 = vpop.f32.mrf.mxu0
        %v497 = vadd.f32 0.0, %v496
        %498 = vmatmul.f32.gmra.mxu0 %v382
        %v499 = vpop.f32.mrf.mxu0
        %v500 = vadd.f32 0.0, %v499
        %501 = vmatmul.f32.gmra.mxu0 %v385
        %v502 = vpop.f32.mrf.mxu0
        %v503 = vadd.f32 0.0, %v502
        %504 = vmatmul.f32.gmra.mxu0 %v388
        %v505 = vpop.f32.mrf.mxu0
        %v506 = vadd.f32 0.0, %v505
        %507 = vmatmul.f32.gmra.mxu0 %v391
        %v508 = vpop.f32.mrf.mxu0
        %v509 = vadd.f32 0.0, %v508
        %510 = vmatmul.f32.gmra.mxu0 %v394
        %v511 = vpop.f32.mrf.mxu0
        %v512 = vadd.f32 0.0, %v511
        %513 = vmatmul.f32.gmra.mxu0 %v397
        %v514 = vpop.f32.mrf.mxu0
        %v515 = vadd.f32 0.0, %v514
        %516 = vmatmul.f32.gmra.mxu0 %v400
        %v517 = vpop.f32.mrf.mxu0
        %v518 = vadd.f32 0.0, %v517
        %519 = vmatmul.f32.gmra.mxu0 %v403
        %v520 = vpop.f32.mrf.mxu0
        %v521 = vadd.f32 0.0, %v520
        %522 = vmatmul.f32.gmra.mxu0 %v406
        %v523 = vpop.f32.mrf.mxu0
        %v524 = vadd.f32 0.0, %v523
        %525 = vmatmul.f32.gmra.mxu0 %v409
        %v526 = vpop.f32.mrf.mxu0
        %v527 = vadd.f32 0.0, %v526
        %528 = vmatmul.f32.gmra.mxu0 %v412
        %v529 = vpop.f32.mrf.mxu0
        %v530 = vadd.f32 0.0, %v529
        %531 = vmatmul.f32.gmra.mxu0 %v415
        %v532 = vpop.f32.mrf.mxu0
        %v533 = vadd.f32 0.0, %v532
        %534 = vdwg.mxu0
        %535 = vmatpush.msra.mxu0 0.0
        %536 = vmatpush.msra.mxu0 0.0
        %537 = vmatpush.msra.mxu0 0.0
        %538 = vmatpush.msra.mxu0 0.0
        %539 = vmatpush.msra.mxu0 0.0
        %540 = vmatpush.msra.mxu0 0.0
        %541 = vmatpush.msra.mxu0 0.0
        %542 = vmatpush.msra.mxu0 0.0
        %543 = vmatpush.msra.mxu0 0.0
        %544 = vmatpush.msra.mxu0 0.0
        %545 = vmatpush.msra.mxu0 0.0
        %546 = vmatpush.msra.mxu0 0.0
        %547 = vmatpush.msra.mxu0 0.0
        %548 = vmatpush.msra.mxu0 0.0
        %549 = vmatpush.msra.mxu0 0.0
        %550 = vmatpush.msra.mxu0 %v420
        %551 = vmatmul.f32.gmra.mxu0 %v322
        %v552 = vpop.f32.mrf.mxu0
        %v553 = vadd.f32 0.0, %v552
        %554 = vmatmul.f32.gmra.mxu0 %v325
        %v555 = vpop.f32.mrf.mxu0
        %v556 = vadd.f32 0.0, %v555
        %557 = vmatmul.f32.gmra.mxu0 %v328
        %v558 = vpop.f32.mrf.mxu0
        %v559 = vadd.f32 0.0, %v558
        %560 = vmatmul.f32.gmra.mxu0 %v331
        %v561 = vpop.f32.mrf.mxu0
        %v562 = vadd.f32 0.0, %v561
        %563 = vmatmul.f32.gmra.mxu0 %v334
        %v564 = vpop.f32.mrf.mxu0
        %v565 = vadd.f32 0.0, %v564
        %566 = vmatmul.f32.gmra.mxu0 %v337
        %v567 = vpop.f32.mrf.mxu0
        %v568 = vadd.f32 0.0, %v567
        %569 = vmatmul.f32.gmra.mxu0 %v340
        %v570 = vpop.f32.mrf.mxu0
        %v571 = vadd.f32 0.0, %v570
        %572 = vmatmul.f32.gmra.mxu0 %v343
        %v573 = vpop.f32.mrf.mxu0
        %v574 = vadd.f32 0.0, %v573
        %575 = vmatmul.f32.gmra.mxu0 %v346
        %v576 = vpop.f32.mrf.mxu0
        %v577 = vadd.f32 0.0, %v576
        %578 = vmatmul.f32.gmra.mxu0 %v349
        %v579 = vpop.f32.mrf.mxu0
        %v580 = vadd.f32 0.0, %v579
        %581 = vmatmul.f32.gmra.mxu0 %v352
        %v582 = vpop.f32.mrf.mxu0
        %v583 = vadd.f32 0.0, %v582
        %584 = vmatmul.f32.gmra.mxu0 %v355
        %v585 = vpop.f32.mrf.mxu0
        %v586 = vadd.f32 0.0, %v585
        %587 = vmatmul.f32.gmra.mxu0 %v358
        %v588 = vpop.f32.mrf.mxu0
        %v589 = vadd.f32 0.0, %v588
        %590 = vmatmul.f32.gmra.mxu0 %v361
        %v591 = vpop.f32.mrf.mxu0
        %v592 = vadd.f32 0.0, %v591
        %593 = vmatmul.f32.gmra.mxu0 %v364
        %v594 = vpop.f32.mrf.mxu0
        %v595 = vadd.f32 0.0, %v594
        %596 = vmatmul.f32.gmra.mxu0 %v367
        %v597 = vpop.f32.mrf.mxu0
        %v598 = vadd.f32 0.0, %v597
        %599 = vmatmul.f32.gmra.mxu0 %v370
        %v600 = vpop.f32.mrf.mxu0
        %v601 = vadd.f32 0.0, %v600
        %602 = vmatmul.f32.gmra.mxu0 %v373
        %v603 = vpop.f32.mrf.mxu0
        %v604 = vadd.f32 0.0, %v603
        %605 = vmatmul.f32.gmra.mxu0 %v376
        %v606 = vpop.f32.mrf.mxu0
        %v607 = vadd.f32 0.0, %v606
        %608 = vmatmul.f32.gmra.mxu0 %v379
        %v609 = vpop.f32.mrf.mxu0
        %v610 = vadd.f32 0.0, %v609
        %611 = vmatmul.f32.gmra.mxu0 %v382
        %v612 = vpop.f32.mrf.mxu0
        %v613 = vadd.f32 0.0, %v612
        %614 = vmatmul.f32.gmra.mxu0 %v385
        %v615 = vpop.f32.mrf.mxu0
        %v616 = vadd.f32 0.0, %v615
        %617 = vmatmul.f32.gmra.mxu0 %v388
        %v618 = vpop.f32.mrf.mxu0
        %v619 = vadd.f32 0.0, %v618
        %620 = vmatmul.f32.gmra.mxu0 %v391
        %v621 = vpop.f32.mrf.mxu0
        %v622 = vadd.f32 0.0, %v621
        %623 = vmatmul.f32.gmra.mxu0 %v394
        %v624 = vpop.f32.mrf.mxu0
        %v625 = vadd.f32 0.0, %v624
        %626 = vmatmul.f32.gmra.mxu0 %v397
        %v627 = vpop.f32.mrf.mxu0
        %v628 = vadd.f32 0.0, %v627
        %629 = vmatmul.f32.gmra.mxu0 %v400
        %v630 = vpop.f32.mrf.mxu0
        %v631 = vadd.f32 0.0, %v630
        %632 = vmatmul.f32.gmra.mxu0 %v403
        %v633 = vpop.f32.mrf.mxu0
        %v634 = vadd.f32 0.0, %v633
        %635 = vmatmul.f32.gmra.mxu0 %v406
        %v636 = vpop.f32.mrf.mxu0
        %v637 = vadd.f32 0.0, %v636
        %638 = vmatmul.f32.gmra.mxu0 %v409
        %v639 = vpop.f32.mrf.mxu0
        %v640 = vadd.f32 0.0, %v639
        %641 = vmatmul.f32.gmra.mxu0 %v412
        %v642 = vpop.f32.mrf.mxu0
        %v643 = vadd.f32 0.0, %v642
        %644 = vmatmul.f32.gmra.mxu0 %v415
        %v645 = vpop.f32.mrf.mxu0
        %v646 = vadd.f32 0.0, %v645
        %647 = vdwg.mxu0
        %648 = vst [vmem:[%s239] sm:$0xff] %v440
        %649 = vst [vmem:[%s239 + $0x8] sm:$0xff] %v553
        %650 = vst [vmem:[%s239 + $0x10] sm:$0xff] %v443
        %651 = vst [vmem:[%s239 + $0x18] sm:$0xff] %v556
        %652 = vst [vmem:[%s239 + $0x20] sm:$0xff] %v446
        %653 = vst [vmem:[%s239 + $0x28] sm:$0xff] %v559
        %654 = vst [vmem:[%s239 + $0x30] sm:$0xff] %v449
        %655 = vst [vmem:[%s239 + $0x38] sm:$0xff] %v562
        %656 = vst [vmem:[%s239 + $0x40] sm:$0xff] %v452
        %657 = vst [vmem:[%s239 + $0x48] sm:$0xff] %v565
        %658 = vst [vmem:[%s239 + $0x50] sm:$0xff] %v455
        %659 = vst [vmem:[%s239 + $0x58] sm:$0xff] %v568
        %660 = vst [vmem:[%s239 + $0x60] sm:$0xff] %v458
        %661 = vst [vmem:[%s239 + $0x68] sm:$0xff] %v571
        %662 = vst [vmem:[%s239 + $0x70] sm:$0xff] %v461
        %663 = vst [vmem:[%s239 + $0x78] sm:$0xff] %v574
        %664 = vst [vmem:[%s239 + $0x80] sm:$0xff] %v464
        %665 = vst [vmem:[%s239 + $0x88] sm:$0xff] %v577
        %666 = vst [vmem:[%s239 + $0x90] sm:$0xff] %v467
        %667 = vst [vmem:[%s239 + $0x98] sm:$0xff] %v580
        %668 = vst [vmem:[%s239 + $0xa0] sm:$0xff] %v470
        %669 = vst [vmem:[%s239 + $0xa8] sm:$0xff] %v583
        %670 = vst [vmem:[%s239 + $0xb0] sm:$0xff] %v473
        %671 = vst [vmem:[%s239 + $0xb8] sm:$0xff] %v586
        %672 = vst [vmem:[%s239 + $0xc0] sm:$0xff] %v476
        %673 = vst [vmem:[%s239 + $0xc8] sm:$0xff] %v589
        %674 = vst [vmem:[%s239 + $0xd0] sm:$0xff] %v479
        %675 = vst [vmem:[%s239 + $0xd8] sm:$0xff] %v592
        %676 = vst [vmem:[%s239 + $0xe0] sm:$0xff] %v482
        %677 = vst [vmem:[%s239 + $0xe8] sm:$0xff] %v595
        %678 = vst [vmem:[%s239 + $0xf0] sm:$0xff] %v485
        %679 = vst [vmem:[%s239 + $0xf8] sm:$0xff] %v598
        %680 = vst [vmem:[%s239 + $0x100] sm:$0xff] %v488
        %681 = vst [vmem:[%s239 + $0x108] sm:$0xff] %v601
        %682 = vst [vmem:[%s239 + $0x110] sm:$0xff] %v491
        %683 = vst [vmem:[%s239 + $0x118] sm:$0xff] %v604
        %684 = vst [vmem:[%s239 + $0x120] sm:$0xff] %v494
        %685 = vst [vmem:[%s239 + $0x128] sm:$0xff] %v607
        %686 = vst [vmem:[%s239 + $0x130] sm:$0xff] %v497
        %687 = vst [vmem:[%s239 + $0x138] sm:$0xff] %v610
        %688 = vst [vmem:[%s239 + $0x140] sm:$0xff] %v500
        %689 = vst [vmem:[%s239 + $0x148] sm:$0xff] %v613
        %690 = vst [vmem:[%s239 + $0x150] sm:$0xff] %v503
        %691 = vst [vmem:[%s239 + $0x158] sm:$0xff] %v616
        %692 = vst [vmem:[%s239 + $0x160] sm:$0xff] %v506
        %693 = vst [vmem:[%s239 + $0x168] sm:$0xff] %v619
        %694 = vst [vmem:[%s239 + $0x170] sm:$0xff] %v509
        %695 = vst [vmem:[%s239 + $0x178] sm:$0xff] %v622
        %696 = vst [vmem:[%s239 + $0x180] sm:$0xff] %v512
        %697 = vst [vmem:[%s239 + $0x188] sm:$0xff] %v625
        %698 = vst [vmem:[%s239 + $0x190] sm:$0xff] %v515
        %699 = vst [vmem:[%s239 + $0x198] sm:$0xff] %v628
        %700 = vst [vmem:[%s239 + $0x1a0] sm:$0xff] %v518
        %701 = vst [vmem:[%s239 + $0x1a8] sm:$0xff] %v631
        %702 = vst [vmem:[%s239 + $0x1b0] sm:$0xff] %v521
        %703 = vst [vmem:[%s239 + $0x1b8] sm:$0xff] %v634
        %704 = vst [vmem:[%s239 + $0x1c0] sm:$0xff] %v524
        %705 = vst [vmem:[%s239 + $0x1c8] sm:$0xff] %v637
        %706 = vst [vmem:[%s239 + $0x1d0] sm:$0xff] %v527
        %707 = vst [vmem:[%s239 + $0x1d8] sm:$0xff] %v640
        %708 = vst [vmem:[%s239 + $0x1e0] sm:$0xff] %v530
        %709 = vst [vmem:[%s239 + $0x1e8] sm:$0xff] %v643
        %710 = vst [vmem:[%s239 + $0x1f0] sm:$0xff] %v533
        %711 = vst [vmem:[%s239 + $0x1f8] sm:$0xff] %v646
        %s712 = sand.u32 %s116, 1
        %s713 = scalar_lea.sflag [#allocation4], %s712
        %s714 = sand.u32 %s116, 1
        %s715 = smul.addr %s714, 512
        %s716 = scalar_lea.vmem [#allocation7], %s715
        // Predicated region
        $region37: #{tpu_custom_call.1} parent=27 // pred_check
          %p717 = pneg %p126
        $region38: #{tpu_custom_call.1} parent=27 // pred_check_branch
          %719 = sbr.rel (%p717) target = $region40
        $region39: #{tpu_custom_call.1} parent=27 // pred_region
          %s720 = smul.u32 32, %s29
          %s721 = smul.u32 2, %s30
          %723 = vsyncadd %s713, 0
          %s724 = smul.addr %s720, 2
          %s725 = sadd.s32 %s721, %s724
          %s726 = smul.addr %s28, 64
          %s727 = sadd.s32 %s725, %s726
          %s728 = smul.addr %s727, 8
          %s729 = scalar_lea.hbm %s2, %s728
          %s730 = sshll.u32 %s716, 4
          %s731 = int_to_ptr.vmem [resolvable:$true] %s730
          %s732 = sshll.u32 %s729, 4
          %s733 = int_to_ptr.hbm [resolvable:$true] %s732
          %738 = dma.vmem_to_hbm [thread:$0]  %s731, 8192, %s733, %s713, 256, 256, 16
        $region40: #{tpu_custom_call.1} parent=27 // pred_fallthru
          _
      $region28: #{tpu_custom_call.1} parent=5 // pred_fallthru
        _
      %p739 = scmp.le.s32.totalorder 2, %s17
      // Predicated region
      $region41: #{tpu_custom_call.1} parent=5 // pred_check
        %p740 = pneg %p739
      $region42: #{tpu_custom_call.1} parent=5 // pred_check_branch
        %742 = sbr.rel (%p740) target = $region44
      $region43: #{tpu_custom_call.1} parent=5 // pred_region
        %s743 = ssub.s32 %s17, 2
        // Predicated region
        $region45: #{tpu_custom_call.1} parent=43 // pred_check
          %p744 = pneg %p132
        $region46: #{tpu_custom_call.1} parent=43 // pred_check_branch
          %746 = sbr.rel (%p744) target = $region48
        $region47: #{tpu_custom_call.1} parent=43 // pred_region
          %s747 = sand.u32 %s117, 1
          %s748 = scalar_lea.sflag [#allocation4], %s747
          %s749 = sand.u32 %s117, 1
          %s750 = smul.addr %s749, 512
          %s751 = scalar_lea.vmem [#allocation7], %s750
          %753 = dma.done %s748, 8192
        $region48: #{tpu_custom_call.1} parent=43 // pred_fallthru
          _
      $region44: #{tpu_custom_call.1} parent=5 // pred_fallthru
        _
    $region6: #{tpu_custom_call.1} parent=1 // loop_footer
      %s21 = sadd.s32 1, %s17
    $region7: #{tpu_custom_call.1} parent=1 // loop_footer_branch
      %16 = sbr.rel target = $region3
    $region8: #{tpu_custom_call.1} parent=1 // loop_exit
      _
    %754 = vsyncpa [#allocation3], 1
    %s755 = scalar_lea.sflag [#allocation3], 1
    %756 = vsyncpa %s755, 1
    %757 = vsyncpa [#allocation6], 1
    %s758 = scalar_lea.sflag [#allocation6], 1
    %759 = vsyncpa %s758, 1
    %760 = vsyncpa [#allocation4], 1
    %s761 = scalar_lea.sflag [#allocation4], 1
    %762 = vsyncpa %s761, 1

</llo_original>
